<compile_context>
chip_gen: v5e
topology: v5e:2x2
jax: 0.10.0
libtpu: 0.0.40
codegen_flags: <defaults>
</compile_context>

<pallas_src>
import functools

import jax
import jax.numpy as jnp
from jax.experimental import pallas as pl
from jax.experimental.pallas import tpu as pltpu

_LANES = 128


def _round_up(x, m):
    return ((x + m - 1) // m) * m


def _sublane_tile(dtype):
    # f32 -> 8 sublanes per tile, bf16 -> 16, int8/fp8 -> 32.
    return max(8, 32 // jnp.dtype(dtype).itemsize)


def _padded_block_bytes(block_shape, dtype):
    """VMEM footprint of one block including (sublane, lane) tile padding."""
    its = jnp.dtype(dtype).itemsize
    dims = list(block_shape)
    dims[-1] = _round_up(dims[-1], _LANES)
    if len(dims) >= 2:
        dims[-2] = _round_up(dims[-2], _sublane_tile(dtype))
    n = 1
    for d in dims:
        n *= d
    return n * its


def _largest_divisor_at_most(n, cap, prefer_multiple_of=None):
    """Largest divisor of n that is <= cap, preferring tile-aligned ones."""
    cap = max(1, min(n, cap))
    fallback = 1
    for t in range(cap, 0, -1):
        if n % t == 0:
            if prefer_multiple_of is None or t % prefer_multiple_of == 0:
                return t
            if fallback == 1:
                fallback = t
    return fallback


def _vmem_capacity_bytes():
    try:
        info = pltpu.get_tpu_info()
        cap = getattr(info, "vmem_capacity_bytes", None)
        if cap:
            return int(cap)
    except Exception:
        pass
    return 64 * 1024 * 1024  # conservative: v7x physical VMEM


def _choose_row_fold(H, W, k):
    """Smallest multiple-of-k row fold rf (rf | H) making rf*W lane friendly."""
    folds = [r for r in range(k, H + 1, k) if H % r == 0]
    for r in folds:                       # exact multiple of 128 lanes
        if (r * W) % _LANES == 0:
            return r
    for r in folds:                       # else at least one full vreg row
        if r * W >= _LANES:
            return r
    return folds[-1]


def _combined_loss_kernel(pred_ref, targ_ref, out_ref, acc_ref, *,
                          coeffs, pool_dims, pool_k):
    """One grid step: accumulate weighted per-lane loss partials into acc_ref.

    pred_ref / targ_ref : one input block (rank 3 or 4; lane-dense whenever
                          the wrapper could arrange it).
    out_ref             : (1, 1, 128) weighted partial loss for this core row.
    acc_ref             : (8, lane_w) f32 accumulator.  Row 0: MSE, 1: MAE,
                          2: SmoothL1, 3 (lanes [0:Fo)): pooled MSE,
                          4 (lane 0): global-sum |diff|.
    """
    c_mse, c_mae, c_sl1, c_pool, c_g = coeffs
    b = pl.program_id(1)

    @pl.when(b == 0)
    def _init():
        acc_ref[...] = jnp.zeros_like(acc_ref)

    d = pred_ref[...].astype(jnp.float32) - targ_ref[...].astype(jnp.float32)
    lane_w = d.shape[-1]
    d2 = d.reshape(-1, lane_w)          # merge leading dims; lane dim untouched

    need_sq = (c_mse > 0.0) or (c_sl1 > 0.0)
    need_abs = (c_mae > 0.0) or (c_sl1 > 0.0)
    sq = d2 * d2 if need_sq else None
    ad = jnp.abs(d2) if need_abs else None

    # Static weights / mean denominators are folded into each block partial
    # (cheap (1, lane_w) scale; better f32 accumulation precision).
    if c_mse > 0.0:
        acc_ref[0:1, :] += c_mse * jnp.sum(sq, axis=0, keepdims=True)
    if c_mae > 0.0:
        acc_ref[1:2, :] += c_mae * jnp.sum(ad, axis=0, keepdims=True)
    if c_sl1 > 0.0:   # SmoothL1, beta=1: 0.5*d^2 if |d|<1 else |d|-0.5
        sl1 = jnp.where(ad < 1.0, 0.5 * sq, ad - 0.5)
        acc_ref[2:3, :] += c_sl1 * jnp.sum(sl1, axis=0, keepdims=True)

    if c_pool > 0.0:
        rf, W = pool_dims
        k = pool_k
        Fo = (rf // k) * (W // k)
        # avg_pool2d(k, stride=k) on the row-folded (.., rf*W) layout is one
        # tall-skinny MXU matmul; the pooling matrix is built from iotas
        # in-kernel (tiny, no extra HBM inputs).
        i_idx = jax.lax.broadcasted_iota(jnp.int32, (lane_w, Fo), 0)
        j_idx = jax.lax.broadcasted_iota(jnp.int32, (lane_w, Fo), 1)
        r = i_idx // W
        c = i_idx - r * W
        win = (r // k) * (W // k) + (c // k)
        pmat = jnp.where(win == j_idx, 1.0 / (k * k), 0.0).astype(jnp.float32)
        pooled = jnp.dot(d2, pmat, preferred_element_type=jnp.float32)
        acc_ref[3:4, 0:Fo] += c_pool * jnp.sum(pooled * pooled, axis=0,
                                               keepdims=True)
        # |sum(pred) - sum(target)| per sample (abs BEFORE the batch mean).
        ps = jnp.sum(d, axis=tuple(range(1, d.ndim)), keepdims=True)
        acc_ref[4:5, 0:1] += (c_g * jnp.sum(jnp.abs(ps))).reshape(1, 1)

    @pl.when(b == pl.num_programs(1) - 1)
    def _finalize():
        # Weights already folded in: one cross-lane reduce + one lane-dense
        # (1,1,128) store per core row.
        out_ref[...] = jnp.full(out_ref.shape, jnp.sum(acc_ref[...]),
                                jnp.float32)


@functools.partial(jax.jit, static_argnames=(
    "mse_weight", "mae_weight", "smooth_l1_weight", "density_weight",
    "num_cores"))
def combined_loss(pred, target, mse_weight=0.5, mae_weight=0.5,
                  smooth_l1_weight=0.0, density_weight=0.0, num_cores=1):
    """Pallas-TPU forward of CombinedLoss; returns a scalar loss."""
    if pred.shape != target.shape:
        raise ValueError("pred/target shape mismatch")
    if pred.ndim != 4:
        raise ValueError("CombinedLoss expects NCHW inputs")

    # ---- weight normalization (CombinedLoss.__init__) ----
    total_w = mse_weight + mae_weight + smooth_l1_weight + density_weight
    if abs(total_w - 1.0) > 1e-6:
        mse_weight = mse_weight / total_w
        mae_weight = mae_weight / total_w
        smooth_l1_weight = smooth_l1_weight / total_w
        density_weight = density_weight / total_w

    N, C, H, W = pred.shape
    k = 4                                          # avg_pool2d kernel / stride
    itemsize = jnp.dtype(pred.dtype).itemsize
    sub = _sublane_tile(pred.dtype)
    total = N * C * H * W
    n_elems = float(total)
    use_density = density_weight > 0.0

    # ---- VMEM-aware block budgeting (padded tile sizes) ----
    vmem_cap = _vmem_capacity_bytes()
    max_block = (8 << 20) if vmem_cap >= (100 << 20) else (4 << 20)

    c_mse = mse_weight / n_elems if mse_weight > 0.0 else 0.0
    c_mae = mae_weight / n_elems if mae_weight > 0.0 else 0.0
    c_sl1 = smooth_l1_weight / n_elems if smooth_l1_weight > 0.0 else 0.0

    if use_density:
        if H % k != 0 or W % k != 0:
            # TODO(synk): avg_pool2d floor-truncation for H/W not divisible by
            # 4 is not implemented in the fused density path.
            raise NotImplementedError(
                "density term requires H % 4 == 0 and W % 4 == 0")
        # Fold rf rows into the lane axis so elementwise terms AND pooling run
        # lane-dense (fixes the W<128 lane starvation flagged in review).
        rf = _choose_row_fold(H, W, k)
        S, F = C * (H // rf), rf * W
        n_pool = float(N * C * (H // k) * (W // k))
        coeffs = (c_mse, c_mae, c_sl1,
                  density_weight / n_pool, 0.1 * density_weight / float(N))
        pool_dims = (rf, W)
        fo = (rf // k) * (W // k)

        nc = num_cores if (num_cores > 1 and N % num_cores == 0) else 1
        n_pc = N // nc
        per_sample = _padded_block_bytes((1, S, F), pred.dtype)
        # TODO(synk): samples larger than the block budget keep TB=1 (no
        # sub-sample split); fine for typical density-map sizes.
        tb = _largest_divisor_at_most(n_pc, max(1, max_block // per_sample))
        g1 = n_pc // tb
        blk = (tb, S, F)
        in_spec = pl.BlockSpec(blk, lambda ci, bi: (ci * g1 + bi, 0, 0))
        inputs = (pred.reshape(N, S, F), target.reshape(N, S, F))
        lane_w = F
    else:
        coeffs = (c_mse, c_mae, c_sl1, 0.0, 0.0)
        pool_dims = None
        fo = 0
        f_sel = next((f for f in (512, 256, 128) if total % f == 0), None)
        if f_sel is not None:
            # Lane-dense flat view of ALL elements; only the leading dim is
            # tiled so block dims always match the array's trailing dims.
            rows = total // f_sel
            nc = num_cores if (num_cores > 1 and rows % num_cores == 0) else 1
            r_pc = rows // nc
            cap_rows = max(1, max_block // (f_sel * itemsize))
            tr = _largest_divisor_at_most(r_pc, cap_rows,
                                          prefer_multiple_of=sub)
            g1 = r_pc // tr
            blk = (1, tr, f_sel)
            in_spec = pl.BlockSpec(blk, lambda ci, bi: (ci * g1 + bi, 0, 0))
            inputs = (pred.reshape(rows // tr, tr, f_sel),
                      target.reshape(rows // tr, tr, f_sel))
            lane_w = f_sel
        else:
            # Odd element counts: NCHW blocks (lane-starved but correct).
            nc = num_cores if (num_cores > 1 and N % num_cores == 0) else 1
            n_pc = N // nc
            per_sample = _padded_block_bytes((1, C, H, W), pred.dtype)
            tb = _largest_divisor_at_most(n_pc, max(1, max_block // per_sample))
            g1 = n_pc // tb
            blk = (tb, C, H, W)
            in_spec = pl.BlockSpec(blk, lambda ci, bi: (ci * g1 + bi, 0, 0, 0))
            inputs = (pred, target)
            lane_w = W

    grid = (nc, g1)

    # 2 inputs x 2 pipeline buffers (padded) + ~6 f32-block temporaries.
    in_pad = _padded_block_bytes(blk, pred.dtype)
    f32_pad = _padded_block_bytes(blk, jnp.float32)
    vmem_est = 4 * in_pad + 6 * f32_pad + (1 << 20)
    vmem_limit = int(min(max(32 << 20, vmem_est + (8 << 20)),
                         max(vmem_cap - (4 << 20), 32 << 20)))

    flops_pe = 2.0 * (c_mse > 0) + 2.0 * (c_mae > 0) + 4.0 * (c_sl1 > 0)
    if use_density:
        flops_pe += 2.0 * fo + 3.0
    cost = pl.CostEstimate(flops=int(flops_pe * total) + 16, transcendentals=0,
                           bytes_accessed=int(2 * total * itemsize) + 512)

    kernel = functools.partial(_combined_loss_kernel, coeffs=coeffs,
                               pool_dims=pool_dims, pool_k=k)

    partials = pl.pallas_call(
        kernel,
        out_shape=jax.ShapeDtypeStruct((nc, 1, _LANES), jnp.float32),
        grid_spec=pltpu.PrefetchScalarGridSpec(
            num_scalar_prefetch=0,
            grid=grid,
            in_specs=[in_spec, in_spec],
            out_specs=pl.BlockSpec((1, 1, _LANES), lambda ci, bi: (ci, 0, 0)),
            scratch_shapes=[pltpu.VMEM((8, lane_w), jnp.float32)],
        ),
        compiler_params=pltpu.CompilerParams(
            # TODO(synk): on v7x pass num_cores=2 and consider
            # pltpu.CORE_PARALLEL on the leading axis to truly shard across
            # the two TensorCores; "parallel" is a no-op on single-TC chips.
            dimension_semantics=("parallel", "arbitrary"),
            vmem_limit_bytes=vmem_limit),
        cost_estimate=cost,
    )(*inputs)

    # Each core row already holds its fully weighted partial loss.
    return jnp.sum(partials[:, 0, 0])


def _reference_loss(pred, target, mse_weight, mae_weight,
                    smooth_l1_weight, density_weight):
    """Pure-JAX reference mirroring the PyTorch forward (sanity check)."""
    total_w = mse_weight + mae_weight + smooth_l1_weight + density_weight
    if abs(total_w - 1.0) > 1e-6:
        mse_weight /= total_w
        mae_weight /= total_w
        smooth_l1_weight /= total_w
        density_weight /= total_w
    d = pred - target
    ad = jnp.abs(d)
    loss = 0.0
    if mse_weight > 0:
        loss += mse_weight * jnp.mean(d * d)
    if mae_weight > 0:
        loss += mae_weight * jnp.mean(ad)
    if smooth_l1_weight > 0:
        loss += smooth_l1_weight * jnp.mean(
            jnp.where(ad < 1.0, 0.5 * d * d, ad - 0.5))
    if density_weight > 0:
        N, C, H, W = pred.shape
        pp = pred.reshape(N, C, H // 4, 4, W // 4, 4).mean(axis=(3, 5))
        pt = target.reshape(N, C, H // 4, 4, W // 4, 4).mean(axis=(3, 5))
        local_mse = jnp.mean((pp - pt) ** 2)
        gdiff = jnp.mean(jnp.abs(
            jnp.sum(pred, axis=(1, 2, 3)) - jnp.sum(target, axis=(1, 2, 3))))
        loss += density_weight * (local_mse + 0.1 * gdiff)
    return loss


if __name__ == "__main__":
    key = jax.random.PRNGKey(0)
    k1, k2 = jax.random.split(key)
    pred = jax.random.uniform(k1, (2, 4, 16, 16), dtype=jnp.float32) * 2.0
    target = jax.random.uniform(k2, (2, 4, 16, 16), dtype=jnp.float32)

    # Default CombinedLoss(): 0.5 MSE + 0.5 MAE -> lane-dense flat path.
    loss_default = combined_loss(pred, target)
    # All four terms -> row-folded lane-dense density path (MXU pooling).
    loss_full = combined_loss(pred, target, mse_weight=0.4, mae_weight=0.3,
                              smooth_l1_weight=0.2, density_weight=0.1)
    # Two "core rows" (megacore layout; runs serially on single-TC chips).
    loss_2core = combined_loss(pred, target, num_cores=2)
    jax.block_until_ready((loss_default, loss_full, loss_2core))

    ref_default = _reference_loss(pred, target, 0.5, 0.5, 0.0, 0.0)
    ref_full = _reference_loss(pred, target, 0.4, 0.3, 0.2, 0.1)
    assert jnp.allclose(loss_default, ref_default, rtol=1e-5, atol=1e-5), (
        loss_default, ref_default)
    assert jnp.allclose(loss_full, ref_full, rtol=1e-5, atol=1e-5), (
        loss_full, ref_full)
    assert jnp.allclose(loss_2core, ref_default, rtol=1e-5, atol=1e-5), (
        loss_2core, ref_default)

    print("KERNEL_OK")
</pallas_src>

<mosaic_0001>
module attributes {stable_mosaic.version = 11 : i64} {
  func.func @_combined_loss_kernel(%arg0: i32, %arg1: i32, %arg2: memref<1x4x512xf32, #tpu.memory_space<vmem>>, %arg3: memref<1x4x512xf32, #tpu.memory_space<vmem>>, %arg4: memref<1x1x128xf32, #tpu.memory_space<vmem>>, %arg5: memref<8x512xf32, #tpu.memory_space<vmem>>) attributes {dimension_semantics = [#tpu.dimension_semantics<parallel>, #tpu.dimension_semantics<arbitrary>], iteration_bounds = array<i64: 1, 1>, scalar_prefetch = 0 : i64, scratch_operands = 1 : i64, tpu.core_type = #tpu.core_type<tc>, window_params = [{transform_indices = @transform_0, window_bounds = array<i64: 1, 4, 512>}, {transform_indices = @transform_1, window_bounds = array<i64: 1, 4, 512>}, {transform_indices = @transform_2, window_bounds = array<i64: 1, 1, 128>}]} {
    %c0_i32 = arith.constant 0 : i32
    %0 = arith.cmpi eq, %arg1, %c0_i32 : i32
    %1 = arith.extui %0 : i1 to i32
    %c0_i32_0 = arith.constant 0 : i32
    %2 = arith.cmpi ne, %1, %c0_i32_0 : i32
    scf.if %2 {
      %cst_18 = arith.constant 0.000000e+00 : f32
      %26 = vector.broadcast %cst_18 : f32 to vector<8x512xf32>
      %c0_19 = arith.constant 0 : index
      %c0_20 = arith.constant 0 : index
      %27 = vector.load %arg5[%c0_19, %c0_20] : memref<8x512xf32, #tpu.memory_space<vmem>>, vector<8x512xf32>
      tpu.vector_store %arg5[%c0_19, %c0_20], %26 {strides = array<i32>} : memref<8x512xf32, #tpu.memory_space<vmem>>, vector<8x512xf32>,
    } else {
    }
    %c0 = arith.constant 0 : index
    %c0_1 = arith.constant 0 : index
    %c0_2 = arith.constant 0 : index
    %3 = vector.load %arg2[%c0, %c0_1, %c0_2] : memref<1x4x512xf32, #tpu.memory_space<vmem>>, vector<1x4x512xf32>
    %c0_3 = arith.constant 0 : index
    %c0_4 = arith.constant 0 : index
    %c0_5 = arith.constant 0 : index
    %4 = vector.load %arg3[%c0_3, %c0_4, %c0_5] : memref<1x4x512xf32, #tpu.memory_space<vmem>>, vector<1x4x512xf32>
    %5 = arith.subf %3, %4 : vector<1x4x512xf32>
    %6 = vector.shape_cast %5 : vector<1x4x512xf32> to vector<4x512xf32>
    %7 = arith.mulf %6, %6 : vector<4x512xf32>
    %8 = math.absf %6 : vector<4x512xf32>
    %c0_6 = arith.constant 0 : index
    %c0_7 = arith.constant 0 : index
    %9 = vector.load %arg5[%c0_6, %c0_7] : memref<8x512xf32, #tpu.memory_space<vmem>>, vector<1x512xf32>
    %cst = arith.constant dense<0.000000e+00> : vector<512xf32>
    %10 = vector.multi_reduction <add>, %7, %cst [0] : vector<4x512xf32> to vector<512xf32>
    %11 = vector.shape_cast %10 : vector<512xf32> to vector<1x512xf32>
    %cst_8 = arith.constant 2.44140625E-4 : f32
    %12 = vector.broadcast %cst_8 : f32 to vector<1x512xf32>
    %13 = arith.mulf %12, %11 : vector<1x512xf32>
    %14 = arith.addf %9, %13 : vector<1x512xf32>
    %c0_9 = arith.constant 0 : index
    %c0_10 = arith.constant 0 : index
    %15 = vector.load %arg5[%c0_9, %c0_10] : memref<8x512xf32, #tpu.memory_space<vmem>>, vector<1x512xf32>
    tpu.vector_store %arg5[%c0_9, %c0_10], %14 {strides = array<i32>} : memref<8x512xf32, #tpu.memory_space<vmem>>, vector<1x512xf32>,
    %c1 = arith.constant 1 : index
    %c0_11 = arith.constant 0 : index
    %16 = vector.load %arg5[%c1, %c0_11] : memref<8x512xf32, #tpu.memory_space<vmem>>, vector<1x512xf32>
    %cst_12 = arith.constant dense<0.000000e+00> : vector<512xf32>
    %17 = vector.multi_reduction <add>, %8, %cst_12 [0] : vector<4x512xf32> to vector<512xf32>
    %18 = vector.shape_cast %17 : vector<512xf32> to vector<1x512xf32>
    %cst_13 = arith.constant 2.44140625E-4 : f32
    %19 = vector.broadcast %cst_13 : f32 to vector<1x512xf32>
    %20 = arith.mulf %19, %18 : vector<1x512xf32>
    %21 = arith.addf %16, %20 : vector<1x512xf32>
    %c1_14 = arith.constant 1 : index
    %c0_15 = arith.constant 0 : index
    %22 = vector.load %arg5[%c1_14, %c0_15] : memref<8x512xf32, #tpu.memory_space<vmem>>, vector<1x512xf32>
    tpu.vector_store %arg5[%c1_14, %c0_15], %21 {strides = array<i32>} : memref<8x512xf32, #tpu.memory_space<vmem>>, vector<1x512xf32>,
    %c0_i32_16 = arith.constant 0 : i32
    %23 = arith.cmpi eq, %arg1, %c0_i32_16 : i32
    %24 = arith.extui %23 : i1 to i32
    %c0_i32_17 = arith.constant 0 : i32
    %25 = arith.cmpi ne, %24, %c0_i32_17 : i32
    scf.if %25 {
      %c0_18 = arith.constant 0 : index
      %c0_19 = arith.constant 0 : index
      %26 = vector.load %arg5[%c0_18, %c0_19] : memref<8x512xf32, #tpu.memory_space<vmem>>, vector<8x512xf32>
      %27 = vector.shape_cast %26 : vector<8x512xf32> to vector<1x8x512xf32>
      %cst_20 = arith.constant dense<0.000000e+00> : vector<1xf32>
      %28 = vector.multi_reduction <add>, %27, %cst_20 [1, 2] : vector<1x8x512xf32> to vector<1xf32>
      %29 = vector.shape_cast %28 : vector<1xf32> to vector<1x1x1xf32>
      %30 = vector.extract %29[0, 0, 0] : f32 from vector<1x1x1xf32>
      %31 = vector.broadcast %30 : f32 to vector<1x1x128xf32>
      %c0_21 = arith.constant 0 : index
      %c0_22 = arith.constant 0 : index
      %c0_23 = arith.constant 0 : index
      %32 = vector.load %arg4[%c0_21, %c0_22, %c0_23] : memref<1x1x128xf32, #tpu.memory_space<vmem>>, vector<1x1x128xf32>
      tpu.vector_store %arg4[%c0_21, %c0_22, %c0_23], %31 {strides = array<i32>} : memref<1x1x128xf32, #tpu.memory_space<vmem>>, vector<1x1x128xf32>,
    } else {
    }
    return
  }
  func.func @transform_0(%arg0: i32, %arg1: i32) -> (i32, i32, i32) {
    %c1_i32 = arith.constant 1 : i32
    %0 = arith.muli %arg0, %c1_i32 : i32
    %1 = arith.addi %0, %arg1 : i32
    %c0_i32 = arith.constant 0 : i32
    %c0_i32_0 = arith.constant 0 : i32
    %c0_i32_1 = arith.constant 0 : i32
    return %1, %c0_i32, %c0_i32_0 : i32, i32, i32
  }
  func.func @transform_1(%arg0: i32, %arg1: i32) -> (i32, i32, i32) {
    %c1_i32 = arith.constant 1 : i32
    %0 = arith.muli %arg0, %c1_i32 : i32
    %1 = arith.addi %0, %arg1 : i32
    %c0_i32 = arith.constant 0 : i32
    %c0_i32_0 = arith.constant 0 : i32
    %c0_i32_1 = arith.constant 0 : i32
    return %1, %c0_i32, %c0_i32_0 : i32, i32, i32
  }
  func.func @transform_2(%arg0: i32, %arg1: i32) -> (i32, i32, i32) {
    %c0_i32 = arith.constant 0 : i32
    %c0_i32_0 = arith.constant 0 : i32
    %c0_i32_1 = arith.constant 0 : i32
    return %arg0, %c0_i32, %c0_i32_0 : i32, i32, i32
  }
}

</mosaic_0001>

<llo_original>
// kernel: combined_loss.1
$region0: #{combined_loss.1}
  #allocation0 [shape = 'u32[]', space=smem, size = 0x4, offset = 0x4, fixed_abs, tag = 'smem constant byte address 0x4 - core index']
  #allocation1 [shape = 'u32[72,128]{1,0:T(1,128)}', space=vmem, size = 0x9000, scoped, tag = 'internal scratch']
  #allocation2 [shape = 'f32[8,512]{1,0:T(8,128)}', space=vmem, size = 0x4000, scoped, tag = 'scratch operand']
  %s0 = inlined_call_operand.vmem [shape: f32[1,4,512], index: 0, kind: input, shape index: {}]
  %s1 = inlined_call_operand.vmem [shape: f32[1,4,512], index: 1, kind: input, shape index: {}]
  %s2 = inlined_call_operand.hbm [shape: f32[1,1,128], index: 2, kind: output, shape index: {}]
  %s3 = sld [smem:[#allocation0]]
  $region26: #{combined_loss.1} parent=0
    _
  %s5 = ssub.s32 1, %s3
  %s6 = scalar_select 0, %s5, %s3
  $region1: #{combined_loss.1} parent=0
    #allocation3 [shape = 'u8[512]{0}', space=vmem, size = 0x400, scoped, tag = 'output window, operand 0, single buffered']
    #allocation4 [shape = 's32[1]{0}', space=sflag, size = 0x4, scoped, tag = 'scoped memory for combined_loss.1']
    %7 = vsyncpa [#allocation4], 0
    // Predicated region
    $region2: #{combined_loss.1} parent=1 // pred_check
      _
    $region3: #{combined_loss.1} parent=1 // pred_check_branch
      %9 = sbr.rel (0) target = $region5
    $region4: #{combined_loss.1} parent=1 // pred_region
      %s10 = sadd.s32 0, 0
      %p11 = scmp.lt.s32.totalorder %s10, 0
      %s12 = scalar_select %p11, %s10, 0
      %s13 = smul.addr %s12, 4
      %s14 = smul.addr %s13, 4
      %s15 = scalar_lea.vmem %s0, %s14
      %s16 = sadd.s32 0, 0
    $region5: #{combined_loss.1} parent=1 // pred_fallthru
      _
    // Predicated region
    $region6: #{combined_loss.1} parent=1 // pred_check
      _
    $region7: #{combined_loss.1} parent=1 // pred_check_branch
      %18 = sbr.rel (0) target = $region9
    $region8: #{combined_loss.1} parent=1 // pred_region
      %s19 = sadd.s32 0, 0
      %p20 = scmp.lt.s32.totalorder %s19, 0
      %s21 = scalar_select %p20, %s19, 0
      %s22 = smul.addr %s21, 4
      %s23 = smul.addr %s22, 4
      %s24 = scalar_lea.vmem %s1, %s23
      %s25 = sadd.s32 0, 0
    $region9: #{combined_loss.1} parent=1 // pred_fallthru
      _
    %s26 = sadd.s32 0, 0
    %p27 = scmp.lt.s32.totalorder %s26, 0
    %s28 = scalar_select %p27, %s26, 0
    %s29 = smul.addr %s28, 4
    %s30 = smul.addr %s29, 4
    %s31 = scalar_lea.vmem %s0, %s30
    %s32 = sadd.s32 0, 0
    %p33 = scmp.lt.s32.totalorder %s32, 0
    %s34 = scalar_select %p33, %s32, 0
    %s35 = smul.addr %s34, 4
    %s36 = smul.addr %s35, 4
    %s37 = scalar_lea.vmem %s1, %s36
    %s38 = sadd.s32 0, 0
    %p39 = scmp.lt.s32.totalorder %s38, 0
    %s40 = scalar_select %p39, %s38, 0
    %s41 = smul.addr %s40, 4
    %s42 = smul.addr %s41, 4
    %s43 = scalar_lea.vmem %s0, %s42
    %s44 = sadd.s32 0, 0
    %s45 = sadd.s32 0, 0
    %p46 = scmp.lt.s32.totalorder %s45, 0
    %s47 = scalar_select %p46, %s45, 0
    %s48 = smul.addr %s47, 4
    %s49 = smul.addr %s48, 4
    %s50 = scalar_lea.vmem %s1, %s49
    %s51 = sadd.s32 0, 0
    %p52 = scmp.eq.s32.totalorder 0, 0
    // Predicated region
    $region10: #{combined_loss.1} parent=1 // pred_check
      %p53 = pneg %p52
    $region11: #{combined_loss.1} parent=1 // pred_check_branch
      %55 = sbr.rel (%p53) target = $region13
    $region12: #{combined_loss.1} parent=1 // pred_region
      %56 = vst [vmem:[#allocation2] sm:$0xff] 0.0
      %57 = vst [vmem:[#allocation2 + $0x8] sm:$0xff] 0.0
      %58 = vst [vmem:[#allocation2 + $0x10] sm:$0xff] 0.0
      %59 = vst [vmem:[#allocation2 + $0x18] sm:$0xff] 0.0
    $region13: #{combined_loss.1} parent=1 // pred_fallthru
      _
    %v60 = vld [vmem:[%s43] sm:$0xff]
    %v61 = vld [vmem:[%s43 + $0x8] sm:$0xff]
    %v62 = vld [vmem:[%s50] sm:$0xff]
    %v63 = vld [vmem:[%s50 + $0x8] sm:$0xff]
    %v64 = vsub.f32 %v60, %v62
    %v65 = vsub.f32 %v61, %v63
    %v66 = vmul.f32 %v64, %v64
    %v67 = vmul.f32 %v65, %v65
    %v68 = vand.u32 2147483647, %v64
    %v69 = vand.u32 2147483647, %v65
    %v70 = vld [vmem:[#allocation2] ss:$8 sm:$0xf]
    %73 = vst [vmem:[#allocation1] ss:$2 sm:$0xff] %v66
    %s74 = scalar_lea.vmem [#allocation1], 16
    %75 = vst [vmem:[%s74] ss:$2 sm:$0xff] %v67
    %v76 = vld.sshfl [vmem:[#allocation1] sm:$0xff pattern:$0x75316420]
    %v77 = vld.sshfl [vmem:[#allocation1 + $0x8] sm:$0xff pattern:$0x75316420]
    %v78 = vld.sshfl [vmem:[#allocation1 + $0x10] sm:$0xff pattern:$0x75316420]
    %v79 = vld.sshfl [vmem:[#allocation1 + $0x18] sm:$0xff pattern:$0x75316420]
    %vm84 = vcmask 1043456
    %v85 = vsel %vm84, %v76, 0.0
    %v86 = vrot.slane %v85, 4
    %v87 = vadd.f32 %v85, %v86
    %v88 = vrot.slane %v87, 2
    %v89 = vadd.f32 %v87, %v88
    %v90 = vrot.slane %v89, 1
    %v91 = vadd.f32 %v89, %v90
    %v92 = vsel %vm84, %v77, 0.0
    %v93 = vrot.slane %v92, 4
    %v94 = vadd.f32 %v92, %v93
    %v95 = vrot.slane %v94, 2
    %v96 = vadd.f32 %v94, %v95
    %v97 = vrot.slane %v96, 1
    %v98 = vadd.f32 %v96, %v97
    %v99 = vsel %vm84, %v78, 0.0
    %v100 = vrot.slane %v99, 4
    %v101 = vadd.f32 %v99, %v100
    %v102 = vrot.slane %v101, 2
    %v103 = vadd.f32 %v101, %v102
    %v104 = vrot.slane %v103, 1
    %v105 = vadd.f32 %v103, %v104
    %v106 = vsel %vm84, %v79, 0.0
    %v107 = vrot.slane %v106, 4
    %v108 = vadd.f32 %v106, %v107
    %v109 = vrot.slane %v108, 2
    %v110 = vadd.f32 %v108, %v109
    %v111 = vrot.slane %v110, 1
    %v112 = vadd.f32 %v110, %v111
    %v113 = vmul.f32 %v91, 0.00024414063
    %v114 = vmul.f32 %v98, 0.00024414063
    %v115 = vmul.f32 %v105, 0.00024414063
    %v116 = vmul.f32 %v112, 0.00024414063
    %v121 = vrot.slane %v114, 7
    %v122 = vrot.slane %v115, 6
    %v123 = vrot.slane %v116, 5
    %vm124 = vcmask 1040384
    %v125 = vsel %vm124, %v113, %v121
    %vm126 = vcmask 1042434
    %v127 = vsel %vm126, %v122, %v123
    %vm128 = vcmask 1041408
    %v129 = vsel %vm128, %v125, %v127
    %v131 = vadd.f32 %v70, %v129
    %v132 = vlaneseq
    %vm133 = vcmp.ge.s32.totalorder %v132, 0
    %vm134 = vcmp.lt.s32.totalorder %v132, 512
    %vm135 = vmand %vm133, %vm134
    %136 = vst.msk [vmem:[#allocation2] ss:$8 sm:$0xf] %vm135, %v131
    %137 = vst.msk [vmem:[#allocation2] ss:$8 sm:$0x0] %vm135, %v131
    %s138 = scalar_lea.vmem [#allocation2], 1
    %v139 = vld [vmem:[%s138] ss:$8 sm:$0xf]
    %142 = vst [vmem:[#allocation1] ss:$2 sm:$0xff] %v68
    %s143 = scalar_lea.vmem [#allocation1], 16
    %144 = vst [vmem:[%s143] ss:$2 sm:$0xff] %v69
    %v145 = vld.sshfl [vmem:[#allocation1] sm:$0xff pattern:$0x75316420]
    %v146 = vld.sshfl [vmem:[#allocation1 + $0x8] sm:$0xff pattern:$0x75316420]
    %v147 = vld.sshfl [vmem:[#allocation1 + $0x10] sm:$0xff pattern:$0x75316420]
    %v148 = vld.sshfl [vmem:[#allocation1 + $0x18] sm:$0xff pattern:$0x75316420]
    %v153 = vsel %vm84, %v145, 0.0
    %v154 = vrot.slane %v153, 4
    %v155 = vadd.f32 %v153, %v154
    %v156 = vrot.slane %v155, 2
    %v157 = vadd.f32 %v155, %v156
    %v158 = vrot.slane %v157, 1
    %v159 = vadd.f32 %v157, %v158
    %v160 = vsel %vm84, %v146, 0.0
    %v161 = vrot.slane %v160, 4
    %v162 = vadd.f32 %v160, %v161
    %v163 = vrot.slane %v162, 2
    %v164 = vadd.f32 %v162, %v163
    %v165 = vrot.slane %v164, 1
    %v166 = vadd.f32 %v164, %v165
    %v167 = vsel %vm84, %v147, 0.0
    %v168 = vrot.slane %v167, 4
    %v169 = vadd.f32 %v167, %v168
    %v170 = vrot.slane %v169, 2
    %v171 = vadd.f32 %v169, %v170
    %v172 = vrot.slane %v171, 1
    %v173 = vadd.f32 %v171, %v172
    %v174 = vsel %vm84, %v148, 0.0
    %v175 = vrot.slane %v174, 4
    %v176 = vadd.f32 %v174, %v175
    %v177 = vrot.slane %v176, 2
    %v178 = vadd.f32 %v176, %v177
    %v179 = vrot.slane %v178, 1
    %v180 = vadd.f32 %v178, %v179
    %v181 = vmul.f32 %v159, 0.00024414063
    %v182 = vmul.f32 %v166, 0.00024414063
    %v183 = vmul.f32 %v173, 0.00024414063
    %v184 = vmul.f32 %v180, 0.00024414063
    %v189 = vrot.slane %v182, 7
    %v190 = vrot.slane %v183, 6
    %v191 = vrot.slane %v184, 5
    %v192 = vsel %vm124, %v181, %v189
    %v193 = vsel %vm126, %v190, %v191
    %v194 = vsel %vm128, %v192, %v193
    %v196 = vadd.f32 %v139, %v194
    %197 = vst.msk [vmem:[%s138] ss:$8 sm:$0xf] %vm135, %v196
    %198 = vst.msk [vmem:[%s138] ss:$8 sm:$0x0] %vm135, %v196
    // Predicated region
    $region14: #{combined_loss.1} parent=1 // pred_check
      %p199 = pneg %p52
    $region15: #{combined_loss.1} parent=1 // pred_check_branch
      %201 = sbr.rel (%p199) target = $region17
    $region16: #{combined_loss.1} parent=1 // pred_region
      %v202 = vld [vmem:[#allocation2] sm:$0xff]
      %v203 = vld [vmem:[#allocation2 + $0x8] sm:$0xff]
      %v204 = vld [vmem:[#allocation2 + $0x10] sm:$0xff]
      %v205 = vld [vmem:[#allocation2 + $0x18] sm:$0xff]
      %v206 = vadd.f32 %v202, %v203
      %v207 = vadd.f32 %v206, %v204
      %v208 = vadd.f32 %v207, %v205
      %209 = vadd.xlane.f32.xlu0 %v208
      %v210 = vpop.xlane.xlu0 %209
      %v211 = vrot.slane %v210, 4
      %v212 = vadd.f32 %v210, %v211
      %v213 = vrot.slane %v212, 2
      %v214 = vadd.f32 %v212, %v213
      %v215 = vrot.slane %v214, 1
      %v216 = vadd.f32 %v214, %v215
      %s217 = vtos %v216
      %v218 = vstv %s217
      %219 = vst [vmem:[#allocation3] sm:$0x1] %v218
    $region17: #{combined_loss.1} parent=1 // pred_fallthru
      _
    // Predicated region
    $region18: #{combined_loss.1} parent=1 // pred_check
      _
    $region19: #{combined_loss.1} parent=1 // pred_check_branch
      %221 = sbr.rel (0) target = $region21
    $region20: #{combined_loss.1} parent=1 // pred_region
      %223 = vsyncadd [#allocation4], 0
      %s225 = sshll.u32 [#allocation3], 4
      %s226 = int_to_ptr.vmem [resolvable:$true] %s225
      %s227 = sshll.u32 %s2, 4
      %s228 = int_to_ptr.hbm [resolvable:$true] %s227
      %230 = dma.vmem_to_hbm [thread:$0]  %s226, 16, %s228, [#allocation4]
    $region21: #{combined_loss.1} parent=1 // pred_fallthru
      _
    // Predicated region
    $region22: #{combined_loss.1} parent=1 // pred_check
      _
    $region23: #{combined_loss.1} parent=1 // pred_check_branch
      %232 = sbr.rel (0) target = $region25
    $region24: #{combined_loss.1} parent=1 // pred_region
      %234 = dma.done [#allocation4], 16
    $region25: #{combined_loss.1} parent=1 // pred_fallthru
      _
    %235 = vsyncpa [#allocation4], 1

</llo_original>
